<compile_context>
chip_gen: v6e
topology: v6e:2x2x1
jax: 0.10.0
libtpu: 0.0.40
codegen_flags: <defaults>
</compile_context>

<pallas_src>
import functools

import jax
import jax.numpy as jnp
from jax.experimental import pallas as pl
from jax.experimental.pallas import tpu as pltpu

LANE = 128
SUB = 8


def _focal_partial_kernel(w_ref, x_ref, lbl_ref, lsum_ref, wsum_ref, *,
                          gamma, ignore_index, num_classes):
    """Accumulate sum(w_y * focal_y) and sum(w_y) for one (Bt, Rt, 128) tile."""
    t = pl.program_id(1)

    # The output blocks are resident across the (arbitrary) tile axis and act as
    # per-batch-group accumulators; reset them on the first tile of each group.
    @pl.when(t == 0)
    def _():
        lsum_ref[...] = jnp.zeros_like(lsum_ref)
        wsum_ref[...] = jnp.zeros_like(wsum_ref)

    bt, _, rt, _ = x_ref.shape
    lbl = lbl_ref[...]                                   # (Bt, Rt, 128) int32

    # Class-axis max: elementwise max over C slabs (pure VPU, no XLU).  Slabs are
    # re-read from VMEM each time so only one is live at once.
    m = x_ref[:, 0, :, :]
    for c in range(1, num_classes):
        m = jnp.maximum(m, x_ref[:, c, :, :])

    # exp over classes + label-class gather of exp and class weight.
    e_sum = jnp.zeros_like(m)
    e_lbl = jnp.zeros_like(m)
    w_lbl = jnp.zeros_like(m)
    for c in range(num_classes):
        e_c = jnp.exp(x_ref[:, c, :, :] - m)
        e_sum = e_sum + e_c
        if c == ignore_index:
            # Statically-known ignored class: contributes to the softmax
            # denominator only, never to the gathered focal term / weight.
            continue
        sel = lbl == c
        e_lbl = jnp.where(sel, e_c, e_lbl)
        w_lbl = jnp.where(sel, w_ref[c], w_lbl)          # scalar from SMEM

    # Softmax prob at the label class only.  EUP reciprocal + one Newton step
    # keeps relative error ~1e-7 while staying off the VPU divide path.
    inv = pl.reciprocal(e_sum, approx=True)
    inv = inv * (2.0 - e_sum * inv)
    p_y = e_lbl * inv
    q = 1.0 - p_y

    # (1 - p)**gamma, specialized to multiplies for non-negative integer gamma.
    g = float(gamma)
    if g.is_integer() and g >= 0:
        n = int(g)
        mod = jnp.ones_like(q) if n == 0 else q
        for _ in range(max(n - 1, 0)):
            mod = mod * q
    else:
        mod = q ** g

    # Ignored pixels (label == ignore_index) never match a class: w_lbl == 0 and
    # e_lbl == 0 there, so both contributions vanish with no extra mask.
    loss_c = w_lbl * (mod * p_y)                         # (Bt, Rt, 128)

    # Fold the tile into the (1, 8, 128) resident output accumulators.
    if rt % SUB == 0:
        k = (bt * rt) // SUB
        fold_l = loss_c.reshape(k, SUB, LANE).sum(axis=0)    # tile-aligned, VPU
        fold_w = w_lbl.reshape(k, SUB, LANE).sum(axis=0)
        lsum_ref[...] = lsum_ref[...] + fold_l[None]
        wsum_ref[...] = wsum_ref[...] + fold_w[None]
    else:
        # Tiny single-tile tail (rt < 8 or not a multiple of 8): a small
        # cross-sublane reduce is fine here.
        ridx = jax.lax.broadcasted_iota(jnp.int32, (1, SUB, LANE), 1)
        lrow = jnp.sum(loss_c, axis=(0, 1), keepdims=True)   # (1, 1, 128)
        wrow = jnp.sum(w_lbl, axis=(0, 1), keepdims=True)
        lsum_ref[...] = lsum_ref[...] + jnp.where(ridx == 0, lrow, 0.0)
        wsum_ref[...] = wsum_ref[...] + jnp.where(ridx == 0, wrow, 0.0)


def _focal_partial(logits4, labels3, w, *, gamma, ignore_index,
                   rows_per_tile, batch_per_tile):
    """Run the kernel over (B, C, R, 128) logits; returns (GB,8,128) partials."""
    B, C, R, lane = logits4.shape
    assert lane == LANE
    Bt = batch_per_tile
    Rt = rows_per_tile
    GB = B // Bt
    NT = R // Rt          # rows beyond NT*Rt (if any) are handled by a tail call

    kernel = functools.partial(_focal_partial_kernel, gamma=gamma,
                               ignore_index=ignore_index, num_classes=C)

    lsum, wsum = pl.pallas_call(
        kernel,
        out_shape=(jax.ShapeDtypeStruct((GB, SUB, LANE), jnp.float32),
                   jax.ShapeDtypeStruct((GB, SUB, LANE), jnp.float32)),
        grid_spec=pltpu.PrefetchScalarGridSpec(
            num_scalar_prefetch=0,
            grid=(GB, NT),
            in_specs=[
                # Class weights: small (C,) table in SMEM, scalar-indexed.
                pl.BlockSpec(memory_space=pltpu.MemorySpace.SMEM),
                # Logits tile: Bt images, all C classes, pixels on (rows, 128).
                pl.BlockSpec((Bt, C, Rt, LANE), lambda gb, t: (gb, 0, t, 0)),
                # Labels tile.
                pl.BlockSpec((Bt, Rt, LANE), lambda gb, t: (gb, t, 0)),
            ],
            out_specs=[
                # Per-batch-group (8,128) partial-sum accumulators, resident
                # across the tile axis; reduced in the wrapper.
                pl.BlockSpec((1, SUB, LANE), lambda gb, t: (gb, 0, 0)),
                pl.BlockSpec((1, SUB, LANE), lambda gb, t: (gb, 0, 0)),
            ]),
        compiler_params=pltpu.CompilerParams(
            dimension_semantics=("parallel", "arbitrary")),
    )(w, logits4, labels3)
    return lsum, wsum


def focal_loss(outs, labels, weight, *, gamma=2.0, ignore_index=-100,
               max_tile_pixels=131072):
    """outs: (B, C, H, W) (or (B, C)) float; labels: (B, H, W) (or (B,)) int."""
    weight = jnp.asarray(weight, jnp.float32).reshape(-1)
    C = weight.shape[0]
    # TODO(synk): 'binary' branch (C == 1 -> BCEWithLogitsLoss) not implemented.

    if outs.ndim == 2:
        outs = outs[:, :, None, None]
        labels = labels[:, None, None]
    B, Cx, H, W = outs.shape
    assert Cx == C, (Cx, C)
    HW = H * W

    logits = outs.astype(jnp.float32).reshape(B, C, HW)
    lbls = labels.astype(jnp.int32).reshape(B, HW)

    # Lane padding only when HW is not a multiple of 128 (rare for segmentation
    # shapes).  TODO(synk): replace with in-kernel lane masking to avoid this
    # extra HBM pass on odd spatial sizes.
    if HW % LANE:
        pad = LANE - HW % LANE
        logits = jnp.pad(logits, ((0, 0), (0, 0), (0, pad)))
        lbls = jnp.pad(lbls, ((0, 0), (0, pad)), constant_values=ignore_index)
        HW += pad
    rows = HW // LANE
    logits = logits.reshape(B, C, rows, LANE)
    lbls = lbls.reshape(B, rows, LANE)

    max_rows = max(SUB, (max_tile_pixels // LANE) // SUB * SUB)

    def best_bt(r):
        # Largest divisor of B whose combined tile still fits max_rows rows.
        bt = 1
        for d in range(1, B + 1):
            if B % d == 0 and d * r <= max_rows:
                bt = d
        return bt

    parts = []
    if rows <= max_rows:
        # One pixel tile; amortize grid overhead by packing images per step.
        parts.append(_focal_partial(
            logits, lbls, weight, gamma=gamma, ignore_index=ignore_index,
            rows_per_tile=rows, batch_per_tile=best_bt(rows)))
    else:
        # Bulk: exact grid over the full tiles of the *unpadded* array.
        parts.append(_focal_partial(
            logits, lbls, weight, gamma=gamma, ignore_index=ignore_index,
            rows_per_tile=max_rows, batch_per_tile=1))
        rem = rows % max_rows
        if rem:
            # Only the (< one tile) remainder is sliced/copied -- no full-tensor
            # jnp.pad pass over the logits.
            bulk = rows - rem
            parts.append(_focal_partial(
                logits[:, :, bulk:], lbls[:, bulk:], weight, gamma=gamma,
                ignore_index=ignore_index, rows_per_tile=rem,
                batch_per_tile=best_bt(rem)))

    num = jnp.float32(0.0)
    den = jnp.float32(0.0)
    for lsum, wsum in parts:
        num = num + jnp.sum(lsum)
        den = den + jnp.sum(wsum)

    # reduction == 'mean' (NLLLoss weighted mean over non-ignored pixels).
    # If every pixel is ignored, den == 0 -> NaN, matching PyTorch NLLLoss.
    return -num / den


def focal_loss_ref(outs, labels, weight, *, gamma=2.0, ignore_index=-100):
    """Pure-JAX reference mirroring the PyTorch forward (multi-class branch)."""
    p = jax.nn.softmax(outs.astype(jnp.float32), axis=1)
    focal = ((1.0 - p) ** gamma) * p
    valid = labels != ignore_index
    safe_lbl = jnp.where(valid, labels, 0)
    picked = jnp.take_along_axis(focal, safe_lbl[:, None, :, :], axis=1)[:, 0]
    w_pix = jnp.asarray(weight, jnp.float32)[safe_lbl]
    num = jnp.sum(jnp.where(valid, -picked * w_pix, 0.0))
    den = jnp.sum(jnp.where(valid, w_pix, 0.0))
    return num / den


if __name__ == "__main__":
    gamma = 2.0
    ignore_index = -100
    # Deterministic per-class weights (module __init__ takes `weight`; C>1 -> 'multi').
    weight = jnp.array([1.0, 2.0, 0.5, 1.5], dtype=jnp.float32)

    def make_case(key, B, C, H, W):
        k1, k2, k3 = jax.random.split(key, 3)
        outs = jax.random.normal(k1, (B, C, H, W), dtype=jnp.float32)
        labels = jax.random.randint(k2, (B, H, W), 0, C, dtype=jnp.int32)
        ignore_mask = jax.random.uniform(k3, (B, H, W)) < 0.1
        labels = jnp.where(ignore_mask, jnp.int32(ignore_index), labels)
        return outs, labels

    key = jax.random.PRNGKey(0)
    k0, k1, k2 = jax.random.split(key, 3)

    cases = [
        # (outs, labels, max_tile_pixels)
        (*make_case(k0, 2, 4, 16, 16), 131072),  # small HW: multi-image tile
        (*make_case(k1, 2, 4, 64, 80), 2048),    # bulk tiles + ragged tail call
        (*make_case(k2, 2, 4, 20, 20), 131072),  # HW % 128 != 0: lane-pad path
    ]

    for outs, labels, mtp in cases:
        loss = focal_loss(outs, labels, weight, gamma=gamma,
                          ignore_index=ignore_index, max_tile_pixels=mtp)
        loss = jax.block_until_ready(loss)
        ref = focal_loss_ref(outs, labels, weight, gamma=gamma,
                             ignore_index=ignore_index)
        assert jnp.allclose(loss, ref, rtol=1e-5, atol=1e-6), (loss, ref)

    print("KERNEL_OK")
</pallas_src>

<mosaic_0001>
module attributes {stable_mosaic.version = 11 : i64} {
  func.func @_focal_partial_kernel(%arg0: i32, %arg1: i32, %arg2: memref<4xf32, #tpu.memory_space<smem>>, %arg3: memref<2x4x2x128xf32, #tpu.memory_space<vmem>>, %arg4: memref<2x2x128xi32, #tpu.memory_space<vmem>>, %arg5: memref<1x8x128xf32, #tpu.memory_space<vmem>>, %arg6: memref<1x8x128xf32, #tpu.memory_space<vmem>>) attributes {dimension_semantics = [#tpu.dimension_semantics<parallel>, #tpu.dimension_semantics<arbitrary>], iteration_bounds = array<i64: 1, 1>, scalar_prefetch = 0 : i64, scratch_operands = 0 : i64, tpu.core_type = #tpu.core_type<tc>, window_params = [{transform_indices = @transform_0, window_bounds = array<i64: 4>}, {transform_indices = @transform_1, window_bounds = array<i64: 2, 4, 2, 128>}, {transform_indices = @transform_2, window_bounds = array<i64: 2, 2, 128>}, {transform_indices = @transform_3, window_bounds = array<i64: 1, 8, 128>}, {transform_indices = @transform_4, window_bounds = array<i64: 1, 8, 128>}]} {
    %c0_i32 = arith.constant 0 : i32
    %0 = arith.cmpi eq, %arg1, %c0_i32 : i32
    %1 = arith.extui %0 : i1 to i32
    %c0_i32_0 = arith.constant 0 : i32
    %2 = arith.cmpi ne, %1, %c0_i32_0 : i32
    scf.if %2 {
      %cst_59 = arith.constant 0.000000e+00 : f32
      %96 = vector.broadcast %cst_59 : f32 to vector<1x8x128xf32>
      %c0_60 = arith.constant 0 : index
      %c0_61 = arith.constant 0 : index
      %c0_62 = arith.constant 0 : index
      %97 = vector.load %arg5[%c0_60, %c0_61, %c0_62] : memref<1x8x128xf32, #tpu.memory_space<vmem>>, vector<1x8x128xf32>
      tpu.vector_store %arg5[%c0_60, %c0_61, %c0_62], %96 {strides = array<i32>} : memref<1x8x128xf32, #tpu.memory_space<vmem>>, vector<1x8x128xf32>,
      %cst_63 = arith.constant 0.000000e+00 : f32
      %98 = vector.broadcast %cst_63 : f32 to vector<1x8x128xf32>
      %c0_64 = arith.constant 0 : index
      %c0_65 = arith.constant 0 : index
      %c0_66 = arith.constant 0 : index
      %99 = vector.load %arg6[%c0_64, %c0_65, %c0_66] : memref<1x8x128xf32, #tpu.memory_space<vmem>>, vector<1x8x128xf32>
      tpu.vector_store %arg6[%c0_64, %c0_65, %c0_66], %98 {strides = array<i32>} : memref<1x8x128xf32, #tpu.memory_space<vmem>>, vector<1x8x128xf32>,
    } else {
    }
    %c0 = arith.constant 0 : index
    %c0_1 = arith.constant 0 : index
    %c0_2 = arith.constant 0 : index
    %3 = vector.load %arg4[%c0, %c0_1, %c0_2] : memref<2x2x128xi32, #tpu.memory_space<vmem>>, vector<2x2x128xi32>
    %c0_3 = arith.constant 0 : index
    %c0_4 = arith.constant 0 : index
    %c0_5 = arith.constant 0 : index
    %c0_6 = arith.constant 0 : index
    %4 = vector.load %arg3[%c0_3, %c0_4, %c0_5, %c0_6] : memref<2x4x2x128xf32, #tpu.memory_space<vmem>>, vector<2x1x2x128xf32>
    %5 = vector.shape_cast %4 : vector<2x1x2x128xf32> to vector<2x2x128xf32>
    %c0_7 = arith.constant 0 : index
    %c1 = arith.constant 1 : index
    %c0_8 = arith.constant 0 : index
    %c0_9 = arith.constant 0 : index
    %6 = vector.load %arg3[%c0_7, %c1, %c0_8, %c0_9] : memref<2x4x2x128xf32, #tpu.memory_space<vmem>>, vector<2x1x2x128xf32>
    %7 = vector.shape_cast %6 : vector<2x1x2x128xf32> to vector<2x2x128xf32>
    %8 = arith.maximumf %5, %7 : vector<2x2x128xf32>
    %c0_10 = arith.constant 0 : index
    %c2 = arith.constant 2 : index
    %c0_11 = arith.constant 0 : index
    %c0_12 = arith.constant 0 : index
    %9 = vector.load %arg3[%c0_10, %c2, %c0_11, %c0_12] : memref<2x4x2x128xf32, #tpu.memory_space<vmem>>, vector<2x1x2x128xf32>
    %10 = vector.shape_cast %9 : vector<2x1x2x128xf32> to vector<2x2x128xf32>
    %11 = arith.maximumf %8, %10 : vector<2x2x128xf32>
    %c0_13 = arith.constant 0 : index
    %c3 = arith.constant 3 : index
    %c0_14 = arith.constant 0 : index
    %c0_15 = arith.constant 0 : index
    %12 = vector.load %arg3[%c0_13, %c3, %c0_14, %c0_15] : memref<2x4x2x128xf32, #tpu.memory_space<vmem>>, vector<2x1x2x128xf32>
    %13 = vector.shape_cast %12 : vector<2x1x2x128xf32> to vector<2x2x128xf32>
    %14 = arith.maximumf %11, %13 : vector<2x2x128xf32>
    %cst = arith.constant 0.000000e+00 : f32
    %15 = vector.broadcast %cst : f32 to vector<2x2x128xf32>
    %cst_16 = arith.constant 0.000000e+00 : f32
    %16 = vector.broadcast %cst_16 : f32 to vector<2x2x128xf32>
    %cst_17 = arith.constant 0.000000e+00 : f32
    %17 = vector.broadcast %cst_17 : f32 to vector<2x2x128xf32>
    %c0_18 = arith.constant 0 : index
    %c0_19 = arith.constant 0 : index
    %c0_20 = arith.constant 0 : index
    %c0_21 = arith.constant 0 : index
    %18 = vector.load %arg3[%c0_18, %c0_19, %c0_20, %c0_21] : memref<2x4x2x128xf32, #tpu.memory_space<vmem>>, vector<2x1x2x128xf32>
    %19 = vector.shape_cast %18 : vector<2x1x2x128xf32> to vector<2x2x128xf32>
    %20 = arith.subf %19, %14 : vector<2x2x128xf32>
    %21 = math.exp %20 : vector<2x2x128xf32>
    %22 = arith.addf %15, %21 : vector<2x2x128xf32>
    %c0_i32_22 = arith.constant 0 : i32
    %23 = vector.broadcast %c0_i32_22 : i32 to vector<2x2x128xi32>
    %24 = arith.cmpi eq, %3, %23 : vector<2x2x128xi32>
    %25 = arith.select %24, %21, %16 : vector<2x2x128xi1>, vector<2x2x128xf32>
    %c0_23 = arith.constant 0 : index
    %26 = memref.load %arg2[%c0_23] : memref<4xf32, #tpu.memory_space<smem>>
    %27 = vector.broadcast %26 : f32 to vector<2x2x128xf32>
    %28 = arith.select %24, %27, %17 : vector<2x2x128xi1>, vector<2x2x128xf32>
    %c0_24 = arith.constant 0 : index
    %c1_25 = arith.constant 1 : index
    %c0_26 = arith.constant 0 : index
    %c0_27 = arith.constant 0 : index
    %29 = vector.load %arg3[%c0_24, %c1_25, %c0_26, %c0_27] : memref<2x4x2x128xf32, #tpu.memory_space<vmem>>, vector<2x1x2x128xf32>
    %30 = vector.shape_cast %29 : vector<2x1x2x128xf32> to vector<2x2x128xf32>
    %31 = arith.subf %30, %14 : vector<2x2x128xf32>
    %32 = math.exp %31 : vector<2x2x128xf32>
    %33 = arith.addf %22, %32 : vector<2x2x128xf32>
    %c1_i32 = arith.constant 1 : i32
    %34 = vector.broadcast %c1_i32 : i32 to vector<2x2x128xi32>
    %35 = arith.cmpi eq, %3, %34 : vector<2x2x128xi32>
    %36 = arith.select %35, %32, %25 : vector<2x2x128xi1>, vector<2x2x128xf32>
    %c1_28 = arith.constant 1 : index
    %37 = memref.load %arg2[%c1_28] : memref<4xf32, #tpu.memory_space<smem>>
    %38 = vector.broadcast %37 : f32 to vector<2x2x128xf32>
    %39 = arith.select %35, %38, %28 : vector<2x2x128xi1>, vector<2x2x128xf32>
    %c0_29 = arith.constant 0 : index
    %c2_30 = arith.constant 2 : index
    %c0_31 = arith.constant 0 : index
    %c0_32 = arith.constant 0 : index
    %40 = vector.load %arg3[%c0_29, %c2_30, %c0_31, %c0_32] : memref<2x4x2x128xf32, #tpu.memory_space<vmem>>, vector<2x1x2x128xf32>
    %41 = vector.shape_cast %40 : vector<2x1x2x128xf32> to vector<2x2x128xf32>
    %42 = arith.subf %41, %14 : vector<2x2x128xf32>
    %43 = math.exp %42 : vector<2x2x128xf32>
    %44 = arith.addf %33, %43 : vector<2x2x128xf32>
    %c2_i32 = arith.constant 2 : i32
    %45 = vector.broadcast %c2_i32 : i32 to vector<2x2x128xi32>
    %46 = arith.cmpi eq, %3, %45 : vector<2x2x128xi32>
    %47 = arith.select %46, %43, %36 : vector<2x2x128xi1>, vector<2x2x128xf32>
    %c2_33 = arith.constant 2 : index
    %48 = memref.load %arg2[%c2_33] : memref<4xf32, #tpu.memory_space<smem>>
    %49 = vector.broadcast %48 : f32 to vector<2x2x128xf32>
    %50 = arith.select %46, %49, %39 : vector<2x2x128xi1>, vector<2x2x128xf32>
    %c0_34 = arith.constant 0 : index
    %c3_35 = arith.constant 3 : index
    %c0_36 = arith.constant 0 : index
    %c0_37 = arith.constant 0 : index
    %51 = vector.load %arg3[%c0_34, %c3_35, %c0_36, %c0_37] : memref<2x4x2x128xf32, #tpu.memory_space<vmem>>, vector<2x1x2x128xf32>
    %52 = vector.shape_cast %51 : vector<2x1x2x128xf32> to vector<2x2x128xf32>
    %53 = arith.subf %52, %14 : vector<2x2x128xf32>
    %54 = math.exp %53 : vector<2x2x128xf32>
    %55 = arith.addf %44, %54 : vector<2x2x128xf32>
    %c3_i32 = arith.constant 3 : i32
    %56 = vector.broadcast %c3_i32 : i32 to vector<2x2x128xi32>
    %57 = arith.cmpi eq, %3, %56 : vector<2x2x128xi32>
    %58 = arith.select %57, %54, %47 : vector<2x2x128xi1>, vector<2x2x128xf32>
    %c3_38 = arith.constant 3 : index
    %59 = memref.load %arg2[%c3_38] : memref<4xf32, #tpu.memory_space<smem>>
    %60 = vector.broadcast %59 : f32 to vector<2x2x128xf32>
    %61 = arith.select %57, %60, %50 : vector<2x2x128xi1>, vector<2x2x128xf32>
    %62 = tpu.reciprocal %55 {approx = true} : vector<2x2x128xf32> -> vector<2x2x128xf32>
    %63 = arith.mulf %55, %62 : vector<2x2x128xf32>
    %cst_39 = arith.constant 2.000000e+00 : f32
    %64 = vector.broadcast %cst_39 : f32 to vector<2x2x128xf32>
    %65 = arith.subf %64, %63 : vector<2x2x128xf32>
    %66 = arith.mulf %62, %65 : vector<2x2x128xf32>
    %67 = arith.mulf %58, %66 : vector<2x2x128xf32>
    %cst_40 = arith.constant 1.000000e+00 : f32
    %68 = vector.broadcast %cst_40 : f32 to vector<2x2x128xf32>
    %69 = arith.subf %68, %67 : vector<2x2x128xf32>
    %70 = arith.mulf %69, %69 : vector<2x2x128xf32>
    %71 = arith.mulf %70, %67 : vector<2x2x128xf32>
    %72 = arith.mulf %61, %71 : vector<2x2x128xf32>
    %73 = tpu.iota {dimensions = array<i32: 1>} : vector<1x8x128xi32>
    %cst_41 = arith.constant dense<0.000000e+00> : vector<128xf32>
    %74 = vector.multi_reduction <add>, %72, %cst_41 [0, 1] : vector<2x2x128xf32> to vector<128xf32>
    %75 = vector.shape_cast %74 : vector<128xf32> to vector<1x1x128xf32>
    %cst_42 = arith.constant dense<0.000000e+00> : vector<128xf32>
    %76 = vector.multi_reduction <add>, %61, %cst_42 [0, 1] : vector<2x2x128xf32> to vector<128xf32>
    %77 = vector.shape_cast %76 : vector<128xf32> to vector<1x1x128xf32>
    %c0_43 = arith.constant 0 : index
    %c0_44 = arith.constant 0 : index
    %c0_45 = arith.constant 0 : index
    %78 = vector.load %arg5[%c0_43, %c0_44, %c0_45] : memref<1x8x128xf32, #tpu.memory_space<vmem>>, vector<1x8x128xf32>
    %c0_i32_46 = arith.constant 0 : i32
    %79 = vector.broadcast %c0_i32_46 : i32 to vector<1x8x128xi32>
    %80 = arith.cmpi eq, %73, %79 : vector<1x8x128xi32>
    %cst_47 = arith.constant 0.000000e+00 : f32
    %81 = vector.shape_cast %75 : vector<1x1x128xf32> to vector<1x1x128xf32>
    %82 = vector.broadcast %81 : vector<1x1x128xf32> to vector<1x8x128xf32>
    %83 = vector.broadcast %cst_47 : f32 to vector<1x8x128xf32>
    %84 = arith.select %80, %82, %83 : vector<1x8x128xi1>, vector<1x8x128xf32>
    %85 = arith.addf %78, %84 : vector<1x8x128xf32>
    %c0_48 = arith.constant 0 : index
    %c0_49 = arith.constant 0 : index
    %c0_50 = arith.constant 0 : index
    %86 = vector.load %arg5[%c0_48, %c0_49, %c0_50] : memref<1x8x128xf32, #tpu.memory_space<vmem>>, vector<1x8x128xf32>
    tpu.vector_store %arg5[%c0_48, %c0_49, %c0_50], %85 {strides = array<i32>} : memref<1x8x128xf32, #tpu.memory_space<vmem>>, vector<1x8x128xf32>,
    %c0_51 = arith.constant 0 : index
    %c0_52 = arith.constant 0 : index
    %c0_53 = arith.constant 0 : index
    %87 = vector.load %arg6[%c0_51, %c0_52, %c0_53] : memref<1x8x128xf32, #tpu.memory_space<vmem>>, vector<1x8x128xf32>
    %c0_i32_54 = arith.constant 0 : i32
    %88 = vector.broadcast %c0_i32_54 : i32 to vector<1x8x128xi32>
    %89 = arith.cmpi eq, %73, %88 : vector<1x8x128xi32>
    %cst_55 = arith.constant 0.000000e+00 : f32
    %90 = vector.shape_cast %77 : vector<1x1x128xf32> to vector<1x1x128xf32>
    %91 = vector.broadcast %90 : vector<1x1x128xf32> to vector<1x8x128xf32>
    %92 = vector.broadcast %cst_55 : f32 to vector<1x8x128xf32>
    %93 = arith.select %89, %91, %92 : vector<1x8x128xi1>, vector<1x8x128xf32>
    %94 = arith.addf %87, %93 : vector<1x8x128xf32>
    %c0_56 = arith.constant 0 : index
    %c0_57 = arith.constant 0 : index
    %c0_58 = arith.constant 0 : index
    %95 = vector.load %arg6[%c0_56, %c0_57, %c0_58] : memref<1x8x128xf32, #tpu.memory_space<vmem>>, vector<1x8x128xf32>
    tpu.vector_store %arg6[%c0_56, %c0_57, %c0_58], %94 {strides = array<i32>} : memref<1x8x128xf32, #tpu.memory_space<vmem>>, vector<1x8x128xf32>,
    return
  }
  func.func @transform_0(%arg0: i32, %arg1: i32) -> i32 {
    %c0_i32 = arith.constant 0 : i32
    %c0_i32_0 = arith.constant 0 : i32
    return %c0_i32 : i32
  }
  func.func @transform_1(%arg0: i32, %arg1: i32) -> (i32, i32, i32, i32) {
    %c0_i32 = arith.constant 0 : i32
    %c0_i32_0 = arith.constant 0 : i32
    %c0_i32_1 = arith.constant 0 : i32
    return %arg0, %c0_i32, %arg1, %c0_i32_0 : i32, i32, i32, i32
  }
  func.func @transform_2(%arg0: i32, %arg1: i32) -> (i32, i32, i32) {
    %c0_i32 = arith.constant 0 : i32
    %c0_i32_0 = arith.constant 0 : i32
    return %arg0, %arg1, %c0_i32 : i32, i32, i32
  }
  func.func @transform_3(%arg0: i32, %arg1: i32) -> (i32, i32, i32) {
    %c0_i32 = arith.constant 0 : i32
    %c0_i32_0 = arith.constant 0 : i32
    %c0_i32_1 = arith.constant 0 : i32
    return %arg0, %c0_i32, %c0_i32_0 : i32, i32, i32
  }
  func.func @transform_4(%arg0: i32, %arg1: i32) -> (i32, i32, i32) {
    %c0_i32 = arith.constant 0 : i32
    %c0_i32_0 = arith.constant 0 : i32
    %c0_i32_1 = arith.constant 0 : i32
    return %arg0, %c0_i32, %c0_i32_0 : i32, i32, i32
  }
}

</mosaic_0001>

<llo_original>
// kernel: tpu_custom_call.1
$region0: #{tpu_custom_call.1}
  #allocation0 [shape = 'u32[]', space=smem, size = 0x4, offset = 0x4, fixed_abs, tag = 'smem constant byte address 0x4 - core index']
  #allocation1 [shape = 'u32[144,128]{1,0:T(1,128)}', space=vmem, size = 0x12000, scoped, tag = 'internal scratch']
  %s0 = inlined_call_operand.hbm [shape: f32[4], index: 0, kind: input, shape index: {}]
  %s1 = inlined_call_operand.hbm [shape: f32[2,4,2,128], index: 1, kind: input, shape index: {}]
  %s2 = inlined_call_operand.hbm [shape: s32[2,2,128], index: 2, kind: input, shape index: {}]
  %s3 = inlined_call_operand.hbm [shape: f32[1,8,128], index: 3, kind: output, shape index: {0}]
  %s4 = inlined_call_operand.hbm [shape: f32[1,8,128], index: 4, kind: output, shape index: {1}]
  %5 = xla_tuple %s3, %s4
  %s6 = sld [smem:[#allocation0]]
  $region46: #{tpu_custom_call.1} parent=0
    _
  %s8 = ssub.s32 1, %s6
  %s9 = scalar_select 0, %s8, %s6
  $region1: #{tpu_custom_call.1} parent=0
    #allocation2 [shape = 'u8[512]{0}', space=smem, size = 0x200, scoped, tag = 'input window, operand 0, single buffered']
    #allocation3 [shape = 's32[1]{0}', space=sflag, size = 0x4, scoped, tag = 'scoped memory for tpu_custom_call.1']
    #allocation4 [shape = 's32[1]{0}', space=sflag, size = 0x4, scoped, tag = 'scoped memory for tpu_custom_call.1']
    #allocation5 [shape = 's32[1]{0}', space=sflag, size = 0x4, scoped, tag = 'scoped memory for tpu_custom_call.1']
    #allocation6 [shape = 'u8[8192]{0}', space=vmem, size = 0x2000, scoped, tag = 'input window, operand 1, single buffered']
    #allocation7 [shape = 'u8[2048]{0}', space=vmem, size = 0x800, scoped, tag = 'input window, operand 2, single buffered']
    #allocation8 [shape = 's32[1]{0}', space=sflag, size = 0x4, scoped, tag = 'scoped memory for tpu_custom_call.1']
    #allocation9 [shape = 'u8[4096]{0}', space=vmem, size = 0x1000, scoped, tag = 'output window, operand 0, single buffered']
    #allocation10 [shape = 'u8[4096]{0}', space=vmem, size = 0x1000, scoped, tag = 'output window, operand 1, single buffered']
    #allocation11 [shape = 's32[1]{0}', space=sflag, size = 0x4, scoped, tag = 'scoped memory for tpu_custom_call.1']
    %10 = vsyncpa [#allocation5], 0
    %11 = vsyncpa [#allocation3], 0
    %12 = vsyncpa [#allocation8], 0
    %13 = vsyncpa [#allocation4], 0
    %14 = vsyncpa [#allocation11], 0
    // Predicated region
    $region2: #{tpu_custom_call.1} parent=1 // pred_check
      _
    $region3: #{tpu_custom_call.1} parent=1 // pred_check_branch
      %16 = sbr.rel (0) target = $region5
    $region4: #{tpu_custom_call.1} parent=1 // pred_region
      %s18 = ssub.s32 16, 16
      %19 = vsyncadd [#allocation5], %s18
      %22 = dma.hbm_to_smem %s0, 16, [#allocation2], [#allocation5]
    $region5: #{tpu_custom_call.1} parent=1 // pred_fallthru
      _
    // Predicated region
    $region6: #{tpu_custom_call.1} parent=1 // pred_check
      _
    $region7: #{tpu_custom_call.1} parent=1 // pred_check_branch
      %24 = sbr.rel (0) target = $region9
    $region8: #{tpu_custom_call.1} parent=1 // pred_region
      %s26 = ssub.s32 256, 256
      %27 = vsyncadd [#allocation3], %s26
      %s28 = sshll.u32 [#allocation6], 4
      %s29 = int_to_ptr.vmem [resolvable:$true] %s28
      %34 = dma.hbm_to_vmem [thread:$0]  %s1, 256, %s29, [#allocation3], 32, 32, 2
    $region9: #{tpu_custom_call.1} parent=1 // pred_fallthru
      _
    // Predicated region
    $region10: #{tpu_custom_call.1} parent=1 // pred_check
      _
    $region11: #{tpu_custom_call.1} parent=1 // pred_check_branch
      %36 = sbr.rel (0) target = $region13
    $region12: #{tpu_custom_call.1} parent=1 // pred_region
      %s38 = ssub.s32 64, 64
      %39 = vsyncadd [#allocation8], %s38
      %s40 = sshll.u32 [#allocation7], 4
      %s41 = int_to_ptr.vmem [resolvable:$true] %s40
      %46 = dma.hbm_to_vmem [thread:$0]  %s2, 64, %s41, [#allocation8], 32, 32, 2
    $region13: #{tpu_custom_call.1} parent=1 // pred_fallthru
      _
    // Predicated region
    $region14: #{tpu_custom_call.1} parent=1 // pred_check
      _
    $region15: #{tpu_custom_call.1} parent=1 // pred_check_branch
      %48 = sbr.rel (0) target = $region17
    $region16: #{tpu_custom_call.1} parent=1 // pred_region
      %49 = dma.done [#allocation5], 16
    $region17: #{tpu_custom_call.1} parent=1 // pred_fallthru
      _
    // Predicated region
    $region18: #{tpu_custom_call.1} parent=1 // pred_check
      _
    $region19: #{tpu_custom_call.1} parent=1 // pred_check_branch
      %51 = sbr.rel (0) target = $region21
    $region20: #{tpu_custom_call.1} parent=1 // pred_region
      %52 = dma.done [#allocation3], 256
    $region21: #{tpu_custom_call.1} parent=1 // pred_fallthru
      _
    // Predicated region
    $region22: #{tpu_custom_call.1} parent=1 // pred_check
      _
    $region23: #{tpu_custom_call.1} parent=1 // pred_check_branch
      %54 = sbr.rel (0) target = $region25
    $region24: #{tpu_custom_call.1} parent=1 // pred_region
      %55 = dma.done [#allocation8], 64
    $region25: #{tpu_custom_call.1} parent=1 // pred_fallthru
      _
    %56 = sfence
    %p57 = scmp.eq.s32.totalorder 0, 0
    // Predicated region
    $region26: #{tpu_custom_call.1} parent=1 // pred_check
      %p58 = pneg %p57
    $region27: #{tpu_custom_call.1} parent=1 // pred_check_branch
      %60 = sbr.rel (%p58) target = $region29
    $region28: #{tpu_custom_call.1} parent=1 // pred_region
      %61 = vst [vmem:[#allocation9] sm:$0xff] 0.0
      %62 = vst [vmem:[#allocation10] sm:$0xff] 0.0
    $region29: #{tpu_custom_call.1} parent=1 // pred_fallthru
      _
    %v63 = vld [vmem:[#allocation7] sm:$0x3]
    %v64 = vld [vmem:[#allocation7 + $0x2] sm:$0x3]
    %v65 = vld [vmem:[#allocation6] sm:$0x3]
    %v66 = vld [vmem:[#allocation6 + $0x8] sm:$0x3]
    %s67 = scalar_lea.vmem [#allocation6], 2
    %v68 = vld [vmem:[%s67] sm:$0x3]
    %v69 = vld [vmem:[%s67 + $0x8] sm:$0x3]
    %v70 = vmax.f32 %v65, %v68
    %v71 = vmax.f32 %v66, %v69
    %s72 = scalar_lea.vmem [#allocation6], 4
    %v73 = vld [vmem:[%s72] sm:$0x3]
    %v74 = vld [vmem:[%s72 + $0x8] sm:$0x3]
    %v75 = vmax.f32 %v70, %v73
    %v76 = vmax.f32 %v71, %v74
    %s77 = scalar_lea.vmem [#allocation6], 6
    %v78 = vld [vmem:[%s77] sm:$0x3]
    %v79 = vld [vmem:[%s77 + $0x8] sm:$0x3]
    %v80 = vmax.f32 %v75, %v78
    %v81 = vmax.f32 %v76, %v79
    %v82 = vsub.f32 %v65, %v80
    %v83 = vsub.f32 %v66, %v81
    %v84 = vmul.f32 %v82, 1.442695
    %v85 = vpow.pop %v84
    %v86 = vmul.f32 %v83, 1.442695
    %v87 = vpow.pop %v86
    %v88 = vadd.f32 %v85, 0.0
    %v89 = vadd.f32 %v87, 0.0
    %vm90 = vcmp.eq.s32.totalorder %v63, 0
    %vm91 = vcmp.eq.s32.totalorder %v64, 0
    %v92 = vsel %vm90, %v85, 0.0
    %v93 = vsel %vm91, %v87, 0.0
    %s94 = sld [smem:[#allocation2]]
    %v95 = vstv %s94
    %v96 = vsel %vm90, %v95, 0.0
    %v97 = vsel %vm91, %v95, 0.0
    %v98 = vsub.f32 %v68, %v80
    %v99 = vsub.f32 %v69, %v81
    %v100 = vmul.f32 %v98, 1.442695
    %v101 = vpow.pop %v100
    %v102 = vmul.f32 %v99, 1.442695
    %v103 = vpow.pop %v102
    %v104 = vadd.f32 %v88, %v101
    %v105 = vadd.f32 %v89, %v103
    %vm106 = vcmp.eq.s32.totalorder %v63, 1
    %vm107 = vcmp.eq.s32.totalorder %v64, 1
    %v108 = vsel %vm106, %v101, %v92
    %v109 = vsel %vm107, %v103, %v93
    %s110 = sld [smem:[#allocation2 + $0x1]]
    %v111 = vstv %s110
    %v112 = vsel %vm106, %v111, %v96
    %v113 = vsel %vm107, %v111, %v97
    %v114 = vsub.f32 %v73, %v80
    %v115 = vsub.f32 %v74, %v81
    %v116 = vmul.f32 %v114, 1.442695
    %v117 = vpow.pop %v116
    %v118 = vmul.f32 %v115, 1.442695
    %v119 = vpow.pop %v118
    %v120 = vadd.f32 %v104, %v117
    %v121 = vadd.f32 %v105, %v119
    %vm122 = vcmp.eq.s32.totalorder %v63, 2
    %vm123 = vcmp.eq.s32.totalorder %v64, 2
    %v124 = vsel %vm122, %v117, %v108
    %v125 = vsel %vm123, %v119, %v109
    %s126 = sld [smem:[#allocation2 + $0x2]]
    %v127 = vstv %s126
    %v128 = vsel %vm122, %v127, %v112
    %v129 = vsel %vm123, %v127, %v113
    %v130 = vsub.f32 %v78, %v80
    %v131 = vsub.f32 %v79, %v81
    %v132 = vmul.f32 %v130, 1.442695
    %v133 = vpow.pop %v132
    %v134 = vmul.f32 %v131, 1.442695
    %v135 = vpow.pop %v134
    %v136 = vadd.f32 %v120, %v133
    %v137 = vadd.f32 %v121, %v135
    %vm138 = vcmp.eq.s32.totalorder %v63, 3
    %vm139 = vcmp.eq.s32.totalorder %v64, 3
    %v140 = vsel %vm138, %v133, %v124
    %v141 = vsel %vm139, %v135, %v125
    %s142 = sld [smem:[#allocation2 + $0x3]]
    %v143 = vstv %s142
    %v144 = vsel %vm138, %v143, %v128
    %v145 = vsel %vm139, %v143, %v129
    %v146 = vrcp.pop %v136
    %v147 = vrcp.pop %v137
    %v148 = vmul.f32 %v136, %v146
    %v149 = vmul.f32 %v137, %v147
    %v150 = vsub.f32 2.0, %v148
    %v151 = vsub.f32 2.0, %v149
    %v152 = vmul.f32 %v146, %v150
    %v153 = vmul.f32 %v147, %v151
    %v154 = vmul.f32 %v140, %v152
    %v155 = vmul.f32 %v141, %v153
    %v156 = vsub.f32 1.0, %v154
    %v157 = vsub.f32 1.0, %v155
    %v158 = vmul.f32 %v156, %v156
    %v159 = vmul.f32 %v157, %v157
    %v160 = vmul.f32 %v158, %v154
    %v161 = vmul.f32 %v159, %v155
    %v162 = vmul.f32 %v144, %v160
    %v163 = vmul.f32 %v145, %v161
    %v164 = vlaneseq
    %v165 = vshrl.u32 %v164, 7
    %vm166 = vcmask 1041408
    %v167 = vsel %vm166, %v162, 0.0
    %v168 = vsel %vm166, %v163, 0.0
    %v169 = vadd.f32 %v167, %v168
    %v170 = vrot.slane %v169, 4
    %v171 = vadd.f32 %v169, %v170
    %v172 = vrot.slane %v171, 2
    %v173 = vadd.f32 %v171, %v172
    %v174 = vrot.slane %v173, 1
    %v175 = vadd.f32 %v173, %v174
    %v176 = vsel %vm166, %v144, 0.0
    %v177 = vsel %vm166, %v145, 0.0
    %v178 = vadd.f32 %v176, %v177
    %v179 = vrot.slane %v178, 4
    %v180 = vadd.f32 %v178, %v179
    %v181 = vrot.slane %v180, 2
    %v182 = vadd.f32 %v180, %v181
    %v183 = vrot.slane %v182, 1
    %v184 = vadd.f32 %v182, %v183
    %v185 = vld [vmem:[#allocation9] sm:$0xff]
    %vm186 = vcmp.eq.s32.totalorder %v165, 0
    %v187 = vsel %vm186, %v175, 0.0
    %v188 = vadd.f32 %v185, %v187
    %189 = vst [vmem:[#allocation9] sm:$0xff] %v188
    %v190 = vld [vmem:[#allocation10] sm:$0xff]
    %v191 = vsel %vm186, %v184, 0.0
    %v192 = vadd.f32 %v190, %v191
    %193 = vst [vmem:[#allocation10] sm:$0xff] %v192
    // Predicated region
    $region30: #{tpu_custom_call.1} parent=1 // pred_check
      _
    $region31: #{tpu_custom_call.1} parent=1 // pred_check_branch
      %195 = sbr.rel (0) target = $region33
    $region32: #{tpu_custom_call.1} parent=1 // pred_region
      %s197 = ssub.s32 128, 128
      %198 = vsyncadd [#allocation4], %s197
      %s200 = sshll.u32 [#allocation9], 4
      %s201 = int_to_ptr.vmem [resolvable:$true] %s200
      %203 = dma.vmem_to_hbm [thread:$0]  %s201, 128, %s3, [#allocation4]
    $region33: #{tpu_custom_call.1} parent=1 // pred_fallthru
      _
    // Predicated region
    $region34: #{tpu_custom_call.1} parent=1 // pred_check
      _
    $region35: #{tpu_custom_call.1} parent=1 // pred_check_branch
      %205 = sbr.rel (0) target = $region37
    $region36: #{tpu_custom_call.1} parent=1 // pred_region
      %s207 = ssub.s32 128, 128
      %208 = vsyncadd [#allocation11], %s207
      %s210 = sshll.u32 [#allocation10], 4
      %s211 = int_to_ptr.vmem [resolvable:$true] %s210
      %213 = dma.vmem_to_hbm [thread:$0]  %s211, 128, %s4, [#allocation11]
    $region37: #{tpu_custom_call.1} parent=1 // pred_fallthru
      _
    // Predicated region
    $region38: #{tpu_custom_call.1} parent=1 // pred_check
      _
    $region39: #{tpu_custom_call.1} parent=1 // pred_check_branch
      %215 = sbr.rel (0) target = $region41
    $region40: #{tpu_custom_call.1} parent=1 // pred_region
      %216 = dma.done [#allocation4], 128
    $region41: #{tpu_custom_call.1} parent=1 // pred_fallthru
      _
    // Predicated region
    $region42: #{tpu_custom_call.1} parent=1 // pred_check
      _
    $region43: #{tpu_custom_call.1} parent=1 // pred_check_branch
      %218 = sbr.rel (0) target = $region45
    $region44: #{tpu_custom_call.1} parent=1 // pred_region
      %219 = dma.done [#allocation11], 128
    $region45: #{tpu_custom_call.1} parent=1 // pred_fallthru
      _
    %220 = vsyncpa [#allocation3], 1
    %221 = vsyncpa [#allocation8], 1
    %222 = vsyncpa [#allocation4], 1
    %223 = vsyncpa [#allocation11], 1
    %224 = vsyncpa [#allocation5], 1

</llo_original>
